<compile_context>
chip_gen: v6e
topology: v6e:2x2x1
jax: 0.10.0
libtpu: 0.0.40
codegen_flags: <defaults>
</compile_context>

<pallas_src>
import functools

import jax
import jax.numpy as jnp
from jax.experimental import pallas as pl
from jax.experimental.pallas import tpu as pltpu

EPS = 1e-5


def _round_up(n, m):
    return (n + m - 1) // m * m


def prenorm_kernel(x_ref, w_ref, bias_ref, o_ref):
    # x_ref: (TILE_R, D)   w_ref: (D, TILE_N)   bias_ref: (1, TILE_N)
    # LayerNorm in f32 on the VPU.
    x = x_ref[...].astype(jnp.float32)
    mean = jnp.mean(x, axis=-1, keepdims=True)
    centered = x - mean
    var = jnp.mean(centered * centered, axis=-1, keepdims=True)
    xn = centered * jax.lax.rsqrt(var + EPS)
    # MXU matmul in the weights' native dtype (bf16 fast path) with f32 acc.
    out = jnp.dot(xn.astype(w_ref.dtype), w_ref[...],
                  preferred_element_type=jnp.float32)
    out = out + bias_ref[...].astype(jnp.float32)
    o_ref[...] = out.astype(o_ref.dtype)


@functools.partial(jax.jit, static_argnames=("tile_r", "tile_n"))
def prenorm_linear(x, gamma, beta, w, bias, *, tile_r=256, tile_n=512):
    """PreNorm(LayerNorm(D) -> Linear(D, D_out)) fused into one Pallas kernel.

    tile_r: rows per MXU pass (use 128 on v5e, 256+ on v6e/v7x).
    tile_n: output-column tile (multiple of 128) bounding the weight block.
    """
    B, S, D = x.shape
    D_out = w.shape[1]
    R = B * S

    # ---- fold the LayerNorm affine into the linear layer (host side) ------
    w_f32 = w.astype(jnp.float32)
    w_eff = (gamma.astype(jnp.float32)[:, None] * w_f32).astype(w.dtype)
    bias_eff = bias.astype(jnp.float32) + beta.astype(jnp.float32) @ w_f32

    # ---- row tiling (MXU M dimension) --------------------------------------
    # Multiple of 8 (f32 sublane); clamp for tiny inputs so we don't over-pad.
    tile_r = max(8, min(tile_r, _round_up(R, 8)))
    R_pad = _round_up(R, tile_r)

    # ---- output-column tiling (bounds the resident weight block in VMEM) --
    if D_out <= tile_n:
        tile_n = D_out                 # block == full extent: always legal
        D_out_pad = D_out
    else:
        assert tile_n % 128 == 0, "tile_n must be a multiple of 128"
        D_out_pad = _round_up(D_out, tile_n)

    x2 = x.reshape(R, D)
    if R_pad != R:
        x2 = jnp.pad(x2, ((0, R_pad - R), (0, 0)))
    if D_out_pad != D_out:
        w_eff = jnp.pad(w_eff, ((0, 0), (0, D_out_pad - D_out)))
        bias_eff = jnp.pad(bias_eff, ((0, D_out_pad - D_out),))
    bias2 = bias_eff.reshape(1, D_out_pad)

    grid = (R_pad // tile_r, D_out_pad // tile_n)

    cost = pl.CostEstimate(
        flops=2 * R_pad * D * D_out_pad,
        transcendentals=R_pad,  # one rsqrt per row
        bytes_accessed=(x2.size * x2.dtype.itemsize
                        + w_eff.size * w_eff.dtype.itemsize
                        + bias2.size * bias2.dtype.itemsize
                        + R_pad * D_out_pad * x.dtype.itemsize),
    )

    out = pl.pallas_call(
        prenorm_kernel,
        out_shape=jax.ShapeDtypeStruct((R_pad, D_out_pad), x.dtype),
        grid_spec=pltpu.PrefetchScalarGridSpec(
            num_scalar_prefetch=0,
            grid=grid,
            in_specs=[
                pl.BlockSpec((tile_r, D), lambda i, j: (i, 0)),
                pl.BlockSpec((D, tile_n), lambda i, j: (0, j)),
                pl.BlockSpec((1, tile_n), lambda i, j: (0, j)),
            ],
            out_specs=pl.BlockSpec((tile_r, tile_n), lambda i, j: (i, j)),
        ),
        compiler_params=pltpu.CompilerParams(
            dimension_semantics=("parallel", "parallel"),
            vmem_limit_bytes=48 * 1024 * 1024,
        ),
        cost_estimate=cost,
    )(x2, w_eff, bias2)

    return out[:R, :D_out].reshape(B, S, D_out)


def reference(x, gamma, beta, w, bias):
    xf = x.astype(jnp.float32)
    mean = jnp.mean(xf, axis=-1, keepdims=True)
    var = jnp.mean((xf - mean) ** 2, axis=-1, keepdims=True)
    xn = (xf - mean) / jnp.sqrt(var + EPS)
    y = xn * gamma.astype(jnp.float32) + beta.astype(jnp.float32)
    return (y @ w.astype(jnp.float32) + bias.astype(jnp.float32)).astype(x.dtype)


if __name__ == "__main__":
    key = jax.random.PRNGKey(0)
    B, S, D, D_OUT = 2, 8, 32, 32
    kx, kg, kb, kw, kbias = jax.random.split(key, 5)

    x = jax.random.normal(kx, (B, S, D), dtype=jnp.float32)
    # Deterministic parameter init (LayerNorm affine + Linear weights).
    gamma = 1.0 + 0.01 * jax.random.normal(kg, (D,), dtype=jnp.float32)
    beta = 0.01 * jax.random.normal(kb, (D,), dtype=jnp.float32)
    w = jax.random.normal(kw, (D, D_OUT), dtype=jnp.float32) / jnp.sqrt(D)
    bias = 0.01 * jax.random.normal(kbias, (D_OUT,), dtype=jnp.float32)

    ref = reference(x, gamma, beta, w, bias)

    # f32 weights: strict numerical check.
    out = jax.block_until_ready(prenorm_linear(x, gamma, beta, w, bias))
    assert out.shape == (B, S, D_OUT)
    assert jnp.allclose(out, ref, atol=1e-4, rtol=1e-4), "f32 mismatch vs reference"

    # bf16 weights: exercises the MXU bf16 fast path; looser tolerance.
    out_bf16 = jax.block_until_ready(
        prenorm_linear(x, gamma, beta, w.astype(jnp.bfloat16), bias))
    assert out_bf16.shape == (B, S, D_OUT)
    assert jnp.allclose(out_bf16, ref, atol=5e-2, rtol=5e-2), "bf16 mismatch vs reference"

    print("KERNEL_OK")
</pallas_src>

<mosaic_0001>
module attributes {stable_mosaic.version = 11 : i64} {
  func.func @prenorm_kernel(%arg0: i32, %arg1: i32, %arg2: memref<16x32xf32, #tpu.memory_space<vmem>>, %arg3: memref<32x32xf32, #tpu.memory_space<vmem>>, %arg4: memref<1x32xf32, #tpu.memory_space<vmem>>, %arg5: memref<16x32xf32, #tpu.memory_space<vmem>>) attributes {dimension_semantics = [#tpu.dimension_semantics<parallel>, #tpu.dimension_semantics<parallel>], iteration_bounds = array<i64: 1, 1>, scalar_prefetch = 0 : i64, scratch_operands = 0 : i64, tpu.core_type = #tpu.core_type<tc>, window_params = [{transform_indices = @transform_0, window_bounds = array<i64: 16, 32>}, {transform_indices = @transform_1, window_bounds = array<i64: 32, 32>}, {transform_indices = @transform_2, window_bounds = array<i64: 1, 32>}, {transform_indices = @transform_3, window_bounds = array<i64: 16, 32>}]} {
    %c0 = arith.constant 0 : index
    %c0_0 = arith.constant 0 : index
    %0 = vector.load %arg2[%c0, %c0_0] : memref<16x32xf32, #tpu.memory_space<vmem>>, vector<16x32xf32>
    %cst = arith.constant dense<0.000000e+00> : vector<16xf32>
    %1 = vector.multi_reduction <add>, %0, %cst [1] : vector<16x32xf32> to vector<16xf32>
    %2 = vector.shape_cast %1 : vector<16xf32> to vector<16x1xf32>
    %cst_1 = arith.constant 3.200000e+01 : f32
    %3 = vector.broadcast %cst_1 : f32 to vector<16x1xf32>
    %4 = arith.divf %2, %3 : vector<16x1xf32>
    %5 = vector.broadcast %4 : vector<16x1xf32> to vector<16x32xf32>
    %6 = arith.subf %0, %5 : vector<16x32xf32>
    %7 = arith.mulf %6, %6 : vector<16x32xf32>
    %cst_2 = arith.constant dense<0.000000e+00> : vector<16xf32>
    %8 = vector.multi_reduction <add>, %7, %cst_2 [1] : vector<16x32xf32> to vector<16xf32>
    %9 = vector.shape_cast %8 : vector<16xf32> to vector<16x1xf32>
    %cst_3 = arith.constant 3.200000e+01 : f32
    %10 = vector.broadcast %cst_3 : f32 to vector<16x1xf32>
    %11 = arith.divf %9, %10 : vector<16x1xf32>
    %cst_4 = arith.constant 9.99999974E-6 : f32
    %12 = vector.broadcast %cst_4 : f32 to vector<16x1xf32>
    %13 = arith.addf %11, %12 : vector<16x1xf32>
    %14 = math.rsqrt %13 : vector<16x1xf32>
    %15 = vector.broadcast %14 : vector<16x1xf32> to vector<16x32xf32>
    %16 = arith.mulf %6, %15 : vector<16x32xf32>
    %c0_5 = arith.constant 0 : index
    %c0_6 = arith.constant 0 : index
    %17 = vector.load %arg3[%c0_5, %c0_6] : memref<32x32xf32, #tpu.memory_space<vmem>>, vector<32x32xf32>
    %cst_7 = arith.constant dense<0.000000e+00> : vector<16x32xf32>
    %18 = tpu.matmul %16, %17, %cst_7 {dimension_numbers = #tpu.dot_dimension_numbers<[1], [0], [0], [1], [0, 0, 1, 1], [], []>} : vector<16x32xf32>, vector<32x32xf32>, vector<16x32xf32> -> vector<16x32xf32>
    %c0_8 = arith.constant 0 : index
    %c0_9 = arith.constant 0 : index
    %19 = vector.load %arg4[%c0_8, %c0_9] : memref<1x32xf32, #tpu.memory_space<vmem>>, vector<1x32xf32>
    %20 = vector.broadcast %19 : vector<1x32xf32> to vector<16x32xf32>
    %21 = arith.addf %18, %20 : vector<16x32xf32>
    %c0_10 = arith.constant 0 : index
    %c0_11 = arith.constant 0 : index
    %22 = vector.load %arg5[%c0_10, %c0_11] : memref<16x32xf32, #tpu.memory_space<vmem>>, vector<16x32xf32>
    tpu.vector_store %arg5[%c0_10, %c0_11], %21 {strides = array<i32>} : memref<16x32xf32, #tpu.memory_space<vmem>>, vector<16x32xf32>,
    return
  }
  func.func @transform_0(%arg0: i32, %arg1: i32) -> (i32, i32) {
    %c0_i32 = arith.constant 0 : i32
    %c0_i32_0 = arith.constant 0 : i32
    return %arg0, %c0_i32 : i32, i32
  }
  func.func @transform_1(%arg0: i32, %arg1: i32) -> (i32, i32) {
    %c0_i32 = arith.constant 0 : i32
    %c0_i32_0 = arith.constant 0 : i32
    return %c0_i32, %arg1 : i32, i32
  }
  func.func @transform_2(%arg0: i32, %arg1: i32) -> (i32, i32) {
    %c0_i32 = arith.constant 0 : i32
    %c0_i32_0 = arith.constant 0 : i32
    return %c0_i32, %arg1 : i32, i32
  }
  func.func @transform_3(%arg0: i32, %arg1: i32) -> (i32, i32) {
    %c0_i32 = arith.constant 0 : i32
    return %arg0, %arg1 : i32, i32
  }
}

</mosaic_0001>

<llo_original>
// kernel: prenorm_linear.1
$region0: #{prenorm_linear.1}
  #allocation0 [shape = 'u32[]', space=smem, size = 0x4, offset = 0x4, fixed_abs, tag = 'smem constant byte address 0x4 - core index']
  #allocation1 [shape = 'u32[144,128]{1,0:T(1,128)}', space=vmem, size = 0x12000, scoped, tag = 'internal scratch']
  %s0 = inlined_call_operand.vmem [shape: f32[16,32], index: 0, kind: input, shape index: {}]
  %s1 = inlined_call_operand.vmem [shape: f32[32,32], index: 1, kind: input, shape index: {}]
  %s2 = inlined_call_operand.vmem [shape: f32[1,32], index: 2, kind: input, shape index: {}]
  %s3 = inlined_call_operand.hbm [shape: f32[16,32], index: 3, kind: output, shape index: {}]
  %s4 = sld [smem:[#allocation0]]
  $region22: #{prenorm_linear.1} parent=0
    _
  %s6 = ssub.s32 1, %s4
  %s7 = scalar_select 0, %s6, %s4
  $region1: #{prenorm_linear.1} parent=0
    #allocation2 [shape = 'u8[8192]{0}', space=vmem, size = 0x2000, scoped, tag = 'output window, operand 0, single buffered']
    #allocation3 [shape = 's32[1]{0}', space=sflag, size = 0x4, scoped, tag = 'scoped memory for prenorm_linear.1']
    %8 = vsyncpa [#allocation3], 0
    // Predicated region
    $region2: #{prenorm_linear.1} parent=1 // pred_check
      _
    $region3: #{prenorm_linear.1} parent=1 // pred_check_branch
      %10 = sbr.rel (0) target = $region5
    $region4: #{prenorm_linear.1} parent=1 // pred_region
      _
    $region5: #{prenorm_linear.1} parent=1 // pred_fallthru
      _
    // Predicated region
    $region6: #{prenorm_linear.1} parent=1 // pred_check
      _
    $region7: #{prenorm_linear.1} parent=1 // pred_check_branch
      %12 = sbr.rel (0) target = $region9
    $region8: #{prenorm_linear.1} parent=1 // pred_region
      _
    $region9: #{prenorm_linear.1} parent=1 // pred_fallthru
      _
    // Predicated region
    $region10: #{prenorm_linear.1} parent=1 // pred_check
      _
    $region11: #{prenorm_linear.1} parent=1 // pred_check_branch
      %14 = sbr.rel (0) target = $region13
    $region12: #{prenorm_linear.1} parent=1 // pred_region
      _
    $region13: #{prenorm_linear.1} parent=1 // pred_fallthru
      _
    %v15 = vld [vmem:[%s0] sm:$0xff]
    %v16 = vld [vmem:[%s0 + $0x8] sm:$0xff]
    %vm17 = vcmask 261120
    %v18 = vsel %vm17, %v15, 0.0
    %19 = vadd.xlane.f32.xlu0 %v18
    %v20 = vpop.xlane.xlu0 %19
    %v21 = vsel %vm17, %v16, 0.0
    %22 = vadd.xlane.f32.xlu0 %v21
    %v23 = vpop.xlane.xlu0 %22
    %v24 = vrcp.pop 32.0
    %v25 = vmul.f32 %v20, %v24
    %v26 = vmul.f32 %v23, %v24
    %v27 = vsub.f32 %v15, %v25
    %v28 = vsub.f32 %v16, %v26
    %v29 = vmul.f32 %v27, %v27
    %v30 = vmul.f32 %v28, %v28
    %v31 = vsel %vm17, %v29, 0.0
    %32 = vadd.xlane.f32.xlu0 %v31
    %v33 = vpop.xlane.xlu0 %32
    %v34 = vsel %vm17, %v30, 0.0
    %35 = vadd.xlane.f32.xlu0 %v34
    %v36 = vpop.xlane.xlu0 %35
    %v37 = vmul.f32 %v33, %v24
    %v38 = vmul.f32 %v36, %v24
    %v39 = vadd.f32 %v37, 1e-05
    %v40 = vadd.f32 %v38, 1e-05
    %v41 = vrsqrt.pop %v39
    %v42 = vrsqrt.pop %v40
    %v43 = vmul.f32 %v27, %v41
    %v44 = vmul.f32 %v28, %v42
    %v45 = vld [vmem:[%s1] sm:$0xff]
    %v46 = vld [vmem:[%s1 + $0x8] sm:$0xff]
    %v47 = vld [vmem:[%s1 + $0x10] sm:$0xff]
    %v48 = vld [vmem:[%s1 + $0x18] sm:$0xff]
    %v49 = vld [vmem:[%s2] sm:$0x1]
    %v51 = vlaneseq
    %v52 = vshrl.u32 %v51, 7
    %v53 = vsub.s32 0, %v52
    %v54 = vrot.slane %v49, %v53
    %v57 = vsel %vm17, %v43, 0
    %v60 = vsel %vm17, %v44, 0
    %62 = vmatprep.subr.mxu0 0.0
    %63 = vmatpush1.msra.mxu0 0.0
    %64 = vmatprep.subr.mxu0 0.0
    %65 = vmatpush1.msra.mxu0 0.0
    %66 = vmatprep.subr.mxu0 0.0
    %67 = vmatpush1.msra.mxu0 0.0
    %68 = vmatprep.subr.mxu0 0.0
    %69 = vmatpush1.msra.mxu0 0.0
    %70 = vmatprep.subr.mxu0 0.0
    %71 = vmatpush1.msra.mxu0 0.0
    %72 = vmatprep.subr.mxu0 0.0
    %73 = vmatpush1.msra.mxu0 0.0
    %74 = vmatprep.subr.mxu0 0.0
    %75 = vmatpush1.msra.mxu0 0.0
    %76 = vmatprep.subr.mxu0 0.0
    %77 = vmatpush1.msra.mxu0 0.0
    %78 = vmatprep.subr.mxu0 0.0
    %79 = vmatpush1.msra.mxu0 0.0
    %80 = vmatprep.subr.mxu0 0.0
    %81 = vmatpush1.msra.mxu0 0.0
    %82 = vmatprep.subr.mxu0 0.0
    %83 = vmatpush1.msra.mxu0 0.0
    %84 = vmatprep.subr.mxu0 0.0
    %85 = vmatpush1.msra.mxu0 0.0
    %86 = vmatprep.subr.mxu0 0.0
    %87 = vmatpush1.msra.mxu0 %v48
    %88 = vmatprep.subr.mxu0 0.0
    %89 = vmatpush1.msra.mxu0 %v47
    %90 = vmatprep.subr.mxu0 0.0
    %91 = vmatpush1.msra.mxu0 %v46
    %92 = vmatprep.subr.mxu0 0.0
    %93 = vmatpush1.msra.mxu0 %v45
    %94 = vmatprep.subr.mxu0 0.0
    %95 = vmatpush2.msra.mxu0 0.0
    %96 = vmatprep.subr.mxu0 0.0
    %97 = vmatpush2.msra.mxu0 0.0
    %98 = vmatprep.subr.mxu0 0.0
    %99 = vmatpush2.msra.mxu0 0.0
    %100 = vmatprep.subr.mxu0 0.0
    %101 = vmatpush2.msra.mxu0 0.0
    %102 = vmatprep.subr.mxu0 0.0
    %103 = vmatpush2.msra.mxu0 0.0
    %104 = vmatprep.subr.mxu0 0.0
    %105 = vmatpush2.msra.mxu0 0.0
    %106 = vmatprep.subr.mxu0 0.0
    %107 = vmatpush2.msra.mxu0 0.0
    %108 = vmatprep.subr.mxu0 0.0
    %109 = vmatpush2.msra.mxu0 0.0
    %110 = vmatprep.subr.mxu0 0.0
    %111 = vmatpush2.msra.mxu0 0.0
    %112 = vmatprep.subr.mxu0 0.0
    %113 = vmatpush2.msra.mxu0 0.0
    %114 = vmatprep.subr.mxu0 0.0
    %115 = vmatpush2.msra.mxu0 0.0
    %116 = vmatprep.subr.mxu0 0.0
    %117 = vmatpush2.msra.mxu0 0.0
    %118 = vmatprep.subr.mxu0 0.0
    %119 = vmatpush2.msra.mxu0 0.0
    %120 = vmatprep.subr.mxu0 0.0
    %121 = vmatpush2.msra.mxu0 0.0
    %122 = vmatprep.subr.mxu0 0.0
    %123 = vmatpush2.msra.mxu0 0.0
    %124 = vmatprep.subr.mxu0 0.0
    %125 = vmatpush2.msra.mxu0 0.0
    %126 = vmatprep.mubr.f32.mxu0 0.0
    %127 = vmatmul.mubr.f32.gmra.mxu0 %v57
    %v128 = vpop.f32.mrf.mxu0
    %v129 = vadd.f32 %v54, %v128
    %v130 = vpop.f32.mrf.mxu0
    %131 = vmatprep.mubr.f32.mxu0 0.0
    %132 = vmatmul.mubr.f32.gmra.mxu0 %v60
    %v133 = vpop.f32.mrf.mxu0
    %v134 = vadd.f32 %v54, %v133
    %v135 = vpop.f32.mrf.mxu0
    %136 = vdwg.mxu0
    %137 = vst.msk [vmem:[#allocation2] sm:$0xff] %vm17, %v129
    %138 = vst.msk [vmem:[#allocation2 + $0x8] sm:$0xff] %vm17, %v134
    // Predicated region
    $region14: #{prenorm_linear.1} parent=1 // pred_check
      _
    $region15: #{prenorm_linear.1} parent=1 // pred_check_branch
      %140 = sbr.rel (0) target = $region17
    $region16: #{prenorm_linear.1} parent=1 // pred_region
      %s142 = ssub.s32 256, 256
      %143 = vsyncadd [#allocation3], %s142
      %s144 = sshll.u32 [#allocation2], 4
      %s145 = int_to_ptr.vmem [resolvable:$true] %s144
      %150 = dma.vmem_to_hbm [thread:$0]  %s145, 256, %s3, [#allocation3], 128, 128, 8
    $region17: #{prenorm_linear.1} parent=1 // pred_fallthru
      _
    // Predicated region
    $region18: #{prenorm_linear.1} parent=1 // pred_check
      _
    $region19: #{prenorm_linear.1} parent=1 // pred_check_branch
      %152 = sbr.rel (0) target = $region21
    $region20: #{prenorm_linear.1} parent=1 // pred_region
      %153 = dma.done [#allocation3], 256
    $region21: #{prenorm_linear.1} parent=1 // pred_fallthru
      _
    %154 = vsyncpa [#allocation3], 1

</llo_original>
